<compile_context>
chip_gen: v6e
topology: v6e:2x2x1
jax: 0.10.0
libtpu: 0.0.40
codegen_flags: <defaults>
</compile_context>

<pallas_src>
import functools

import jax
import jax.numpy as jnp
from jax.experimental import pallas as pl
from jax.experimental.pallas import tpu as pltpu


def _round_up(x, m):
    return ((x + m - 1) // m) * m


def _cdiv(a, b):
    return -(-a // b)


def _vmem_limit_bytes():
    """Generation-aware scoped-VMEM cap (conservative default for v7x/unknown)."""
    try:
        kind = jax.devices()[0].device_kind.lower()
    except Exception:
        kind = ""
    if ("v2" in kind) or ("v3" in kind):
        return 12 * 1024 * 1024          # 16 MiB physical
    if ("v5" in kind) or ("v6" in kind):
        return 96 * 1024 * 1024          # 128 MiB physical
    return 48 * 1024 * 1024              # v7x: 64 MiB physical per TensorCore


def _choose_batch_tile(batch, c1, c2, itemsize, vmem_budget_bytes):
    """Largest sublane-aligned batch tile whose VMEM working set fits the budget."""
    c1p = _round_up(max(c1, 1), 128)     # lane-padded widths as held in VMEM
    c2p = _round_up(max(c2, 1), 128)
    per_row = (
        2 * (c1p + c2p) * itemsize       # double-buffered logits input tiles
        + 4 * 128 * 4                    # packed-label tile (x2 bufs) + 2 f32 row accumulators
        + 3 * (c1p + c2p) * 4            # live f32 intermediates inside the body
    )
    tb = vmem_budget_bytes // max(per_row, 1)
    tb = max(8, min(8192, (tb // 8) * 8))
    # Each core (parallel grid index) handles at most ~half the batch.
    tb = min(tb, _round_up(max(_cdiv(batch, 2), 1), 8))
    # Rebalance so both cores get (nearly) equal tile counts (never grows tb).
    n_tiles = _cdiv(batch, tb)
    n_even = _round_up(n_tiles, 2)
    tb = _round_up(_cdiv(batch, n_even), 8)
    return int(tb)


def _fused_ce_kernel(cate_logits_ref, class_logits_ref, labels_ref,
                     out_ref, acc_cate_ref, acc_class_ref,
                     *, batch, tiles_per_core):
    """One batch tile of BOTH cross-entropy heads.

    cate_logits_ref : (tb, C1) VMEM   category logits tile
    class_logits_ref: (tb, C2) VMEM   class logits tile
    labels_ref      : (tb, 2)  VMEM   int32 [cate_label, class_label]
    out_ref         : (1,1,128) VMEM  per-core partial sums (lane0=cate, lane1=class)
    acc_*_ref       : (tb, 1)  VMEM   f32 running per-row loss sums across i
    """
    p = pl.program_id(0)            # core-split index ("parallel")
    i = pl.program_id(1)            # batch-tile index within this split ("arbitrary")
    n = pl.num_programs(1)

    @pl.when(i == 0)
    def _init():
        acc_cate_ref[...] = jnp.zeros_like(acc_cate_ref)
        acc_class_ref[...] = jnp.zeros_like(acc_class_ref)

    tb = cate_logits_ref.shape[0]
    g = p * tiles_per_core + i      # global (unclamped) tile index
    row = g * tb + jax.lax.broadcasted_iota(jnp.int32, (tb, 1), 0)
    valid = row < batch             # (tb, 1) bool: masks ragged tail / OOB tiles

    labels = labels_ref[...]        # (tb, 2) int32

    def per_row_loss(logits_ref, label_col):
        logits = logits_ref[...].astype(jnp.float32)          # (tb, C)
        m = jnp.max(logits, axis=-1, keepdims=True)
        shifted = logits - m                                   # row max cancels below
        ids = jax.lax.broadcasted_iota(jnp.int32, logits.shape, 1)
        picked = jnp.sum(jnp.where(ids == label_col, shifted, 0.0),
                         axis=-1, keepdims=True)
        sumexp = jnp.sum(jnp.exp(shifted), axis=-1, keepdims=True)
        return jnp.log(sumexp) - picked                        # (tb, 1)

    # SELECT (not multiply): tail-block rows are unspecified memory and may be
    # NaN/Inf; NaN*0 would poison the sum.
    acc_cate_ref[...] += jnp.where(valid, per_row_loss(cate_logits_ref, labels[:, 0:1]), 0.0)
    acc_class_ref[...] += jnp.where(valid, per_row_loss(class_logits_ref, labels[:, 1:2]), 0.0)

    @pl.when(i == n - 1)
    def _finalize():
        s_cate = jnp.sum(acc_cate_ref[...])
        s_class = jnp.sum(acc_class_ref[...])
        lane = jax.lax.broadcasted_iota(jnp.int32, (1, 1, 128), 2)
        out_ref[...] = jnp.where(lane == 0, s_cate,
                                 jnp.where(lane == 1, s_class, 0.0))


def loss_category_class_ce(y_cate_hat, y_cate, y_class_hat, y_class, config):
    """JAX/Pallas equivalent of Loss_category_class_CE.forward."""
    b, c1 = y_cate_hat.shape
    b2, c2 = y_class_hat.shape
    assert b == b2, "both heads must share the batch dimension"
    itemsize = jnp.dtype(y_cate_hat.dtype).itemsize

    vmem_limit = _vmem_limit_bytes()
    tb = _choose_batch_tile(b, c1, c2, itemsize, vmem_budget_bytes=vmem_limit // 2)

    n_tiles_total = _cdiv(b, tb)          # ragged tail handled by in-kernel mask
    tiles_per_core = _cdiv(n_tiles_total, 2)
    last_blk = n_tiles_total - 1

    # One packed label array: one DMA / one lane-padded VMEM buffer per step.
    labels = jnp.stack([y_cate.astype(jnp.int32), y_class.astype(jnp.int32)], axis=1)

    # Clamp block indices in the index_map; fully out-of-range tiles are still
    # zeroed by the in-kernel row mask (which uses the unclamped index).
    def _blk(p, i):
        return (jnp.minimum(p * tiles_per_core + i, last_blk), 0)

    kernel = functools.partial(_fused_ce_kernel, batch=b,
                               tiles_per_core=tiles_per_core)

    cost = pl.CostEstimate(
        flops=6 * b * (c1 + c2),
        transcendentals=b * (c1 + c2 + 2),
        bytes_accessed=b * (c1 + c2) * itemsize + b * 2 * 4 + 2 * 128 * 4,
    )

    partials = pl.pallas_call(
        kernel,
        out_shape=jax.ShapeDtypeStruct((2, 1, 128), jnp.float32),
        grid=(2, tiles_per_core),
        in_specs=[
            pl.BlockSpec((tb, c1), _blk),        # category logits
            pl.BlockSpec((tb, c2), _blk),        # class logits
            pl.BlockSpec((tb, 2), _blk),         # packed labels
        ],
        out_specs=pl.BlockSpec((1, 1, 128), lambda p, i: (p, 0, 0)),
        scratch_shapes=[pltpu.VMEM((tb, 1), jnp.float32),
                        pltpu.VMEM((tb, 1), jnp.float32)],
        compiler_params=pltpu.CompilerParams(
            dimension_semantics=("parallel", "arbitrary"),
            vmem_limit_bytes=vmem_limit,
        ),
        cost_estimate=cost,
    )(y_cate_hat, y_class_hat, labels)

    # Combine per-core partial sums; mean + lambda scaling on 2 scalars.
    sum_cate = jnp.sum(partials[:, 0, 0])
    sum_class = jnp.sum(partials[:, 0, 1])
    inv_b = 1.0 / float(b)
    return {
        "loss_category": sum_cate * (float(config["lambda_cate"]) * inv_b),
        "loss_class": sum_class * (float(config["lambda_class"]) * inv_b),
    }


def _ref_ce_mean(logits, labels, scale):
    logits = logits.astype(jnp.float32)
    lse = jax.nn.logsumexp(logits, axis=-1)
    picked = jnp.take_along_axis(
        logits, labels.astype(jnp.int32)[:, None], axis=-1)[:, 0]
    return jnp.mean(lse - picked) * scale


if __name__ == "__main__":
    key = jax.random.PRNGKey(0)
    k1, k2, k3, k4 = jax.random.split(key, 4)

    batch = 4
    num_classes = 8   # category head
    out_dim = 16      # class head

    y_cate_hat = jax.random.normal(k1, (batch, num_classes), dtype=jnp.float32)
    y_cate = jax.random.randint(k2, (batch,), 0, num_classes, dtype=jnp.int32)
    y_class_hat = jax.random.normal(k3, (batch, out_dim), dtype=jnp.float32)
    y_class = jax.random.randint(k4, (batch,), 0, out_dim, dtype=jnp.int32)

    config = {"lambda_cate": 0.7, "lambda_class": 1.3}

    out = loss_category_class_ce(y_cate_hat, y_cate, y_class_hat, y_class, config)
    out = jax.tree_util.tree_map(jax.block_until_ready, out)

    # correctness check against a pure-JAX reference
    ref_cate = _ref_ce_mean(y_cate_hat, y_cate, config["lambda_cate"])
    ref_class = _ref_ce_mean(y_class_hat, y_class, config["lambda_class"])
    assert jnp.allclose(out["loss_category"], ref_cate, atol=1e-5, rtol=1e-5)
    assert jnp.allclose(out["loss_class"], ref_class, atol=1e-5, rtol=1e-5)

    print("KERNEL_OK")
</pallas_src>

<mosaic_0001>
module attributes {stable_mosaic.version = 11 : i64} {
  func.func @_fused_ce_kernel(%arg0: i32, %arg1: i32, %arg2: memref<8x8xf32, #tpu.memory_space<vmem>>, %arg3: memref<8x16xf32, #tpu.memory_space<vmem>>, %arg4: memref<8x2xi32, #tpu.memory_space<vmem>>, %arg5: memref<1x1x128xf32, #tpu.memory_space<vmem>>, %arg6: memref<8x1xf32, #tpu.memory_space<vmem>>, %arg7: memref<8x1xf32, #tpu.memory_space<vmem>>) attributes {dimension_semantics = [#tpu.dimension_semantics<parallel>, #tpu.dimension_semantics<arbitrary>], iteration_bounds = array<i64: 2, 1>, scalar_prefetch = 0 : i64, scratch_operands = 2 : i64, tpu.core_type = #tpu.core_type<tc>, window_params = [{transform_indices = @transform_0, window_bounds = array<i64: 8, 8>}, {transform_indices = @transform_1, window_bounds = array<i64: 8, 16>}, {transform_indices = @transform_2, window_bounds = array<i64: 8, 2>}, {transform_indices = @transform_3, window_bounds = array<i64: 1, 1, 128>}]} {
    %c0_i32 = arith.constant 0 : i32
    %0 = arith.cmpi eq, %arg1, %c0_i32 : i32
    %1 = arith.extui %0 : i1 to i32
    %c0_i32_0 = arith.constant 0 : i32
    %2 = arith.cmpi ne, %1, %c0_i32_0 : i32
    scf.if %2 {
      %cst_25 = arith.constant 0.000000e+00 : f32
      %61 = vector.broadcast %cst_25 : f32 to vector<8x1xf32>
      %c0_26 = arith.constant 0 : index
      %c0_27 = arith.constant 0 : index
      %62 = vector.load %arg6[%c0_26, %c0_27] : memref<8x1xf32, #tpu.memory_space<vmem>>, vector<8x1xf32>
      tpu.vector_store %arg6[%c0_26, %c0_27], %61 {strides = array<i32>} : memref<8x1xf32, #tpu.memory_space<vmem>>, vector<8x1xf32>,
      %cst_28 = arith.constant 0.000000e+00 : f32
      %63 = vector.broadcast %cst_28 : f32 to vector<8x1xf32>
      %c0_29 = arith.constant 0 : index
      %c0_30 = arith.constant 0 : index
      %64 = vector.load %arg7[%c0_29, %c0_30] : memref<8x1xf32, #tpu.memory_space<vmem>>, vector<8x1xf32>
      tpu.vector_store %arg7[%c0_29, %c0_30], %63 {strides = array<i32>} : memref<8x1xf32, #tpu.memory_space<vmem>>, vector<8x1xf32>,
    } else {
    }
    %c1_i32 = arith.constant 1 : i32
    %3 = arith.muli %arg0, %c1_i32 : i32
    %4 = arith.addi %3, %arg1 : i32
    %c8_i32 = arith.constant 8 : i32
    %5 = arith.muli %4, %c8_i32 : i32
    %6 = tpu.iota {dimensions = array<i32: 0>} : vector<8x1xi32>
    %7 = vector.broadcast %5 : i32 to vector<8x1xi32>
    %8 = arith.addi %7, %6 : vector<8x1xi32>
    %c4_i32 = arith.constant 4 : i32
    %9 = vector.broadcast %c4_i32 : i32 to vector<8x1xi32>
    %10 = arith.cmpi slt, %8, %9 : vector<8x1xi32>
    %c0 = arith.constant 0 : index
    %c0_1 = arith.constant 0 : index
    %11 = vector.load %arg4[%c0, %c0_1] : memref<8x2xi32, #tpu.memory_space<vmem>>, vector<8x2xi32>
    %c0_2 = arith.constant 0 : index
    %c0_3 = arith.constant 0 : index
    %12 = vector.load %arg6[%c0_2, %c0_3] : memref<8x1xf32, #tpu.memory_space<vmem>>, vector<8x1xf32>
    %13 = vector.extract_strided_slice %11 {offsets = [0, 0], sizes = [8, 1], strides = [1, 1]} : vector<8x2xi32> to vector<8x1xi32>
    %c0_4 = arith.constant 0 : index
    %c0_5 = arith.constant 0 : index
    %14 = vector.load %arg2[%c0_4, %c0_5] : memref<8x8xf32, #tpu.memory_space<vmem>>, vector<8x8xf32>
    %cst = arith.constant dense<0xFF800000> : vector<8xf32>
    %15 = vector.multi_reduction <maximumf>, %14, %cst [1] : vector<8x8xf32> to vector<8xf32>
    %16 = vector.shape_cast %15 : vector<8xf32> to vector<8x1xf32>
    %17 = vector.broadcast %16 : vector<8x1xf32> to vector<8x8xf32>
    %18 = arith.subf %14, %17 : vector<8x8xf32>
    %19 = tpu.iota {dimensions = array<i32: 1>} : vector<8x8xi32>
    %20 = vector.broadcast %13 : vector<8x1xi32> to vector<8x8xi32>
    %21 = arith.cmpi eq, %19, %20 : vector<8x8xi32>
    %cst_6 = arith.constant 0.000000e+00 : f32
    %22 = vector.broadcast %cst_6 : f32 to vector<8x8xf32>
    %23 = arith.select %21, %18, %22 : vector<8x8xi1>, vector<8x8xf32>
    %cst_7 = arith.constant dense<0.000000e+00> : vector<8xf32>
    %24 = vector.multi_reduction <add>, %23, %cst_7 [1] : vector<8x8xf32> to vector<8xf32>
    %25 = vector.shape_cast %24 : vector<8xf32> to vector<8x1xf32>
    %26 = math.exp %18 : vector<8x8xf32>
    %cst_8 = arith.constant dense<0.000000e+00> : vector<8xf32>
    %27 = vector.multi_reduction <add>, %26, %cst_8 [1] : vector<8x8xf32> to vector<8xf32>
    %28 = vector.shape_cast %27 : vector<8xf32> to vector<8x1xf32>
    %29 = math.log %28 : vector<8x1xf32>
    %30 = arith.subf %29, %25 : vector<8x1xf32>
    %cst_9 = arith.constant 0.000000e+00 : f32
    %31 = vector.broadcast %cst_9 : f32 to vector<8x1xf32>
    %32 = arith.select %10, %30, %31 : vector<8x1xi1>, vector<8x1xf32>
    %33 = arith.addf %12, %32 : vector<8x1xf32>
    %c0_10 = arith.constant 0 : index
    %c0_11 = arith.constant 0 : index
    %34 = vector.load %arg6[%c0_10, %c0_11] : memref<8x1xf32, #tpu.memory_space<vmem>>, vector<8x1xf32>
    tpu.vector_store %arg6[%c0_10, %c0_11], %33 {strides = array<i32>} : memref<8x1xf32, #tpu.memory_space<vmem>>, vector<8x1xf32>,
    %c0_12 = arith.constant 0 : index
    %c0_13 = arith.constant 0 : index
    %35 = vector.load %arg7[%c0_12, %c0_13] : memref<8x1xf32, #tpu.memory_space<vmem>>, vector<8x1xf32>
    %36 = vector.extract_strided_slice %11 {offsets = [0, 1], sizes = [8, 1], strides = [1, 1]} : vector<8x2xi32> to vector<8x1xi32>
    %c0_14 = arith.constant 0 : index
    %c0_15 = arith.constant 0 : index
    %37 = vector.load %arg3[%c0_14, %c0_15] : memref<8x16xf32, #tpu.memory_space<vmem>>, vector<8x16xf32>
    %cst_16 = arith.constant dense<0xFF800000> : vector<8xf32>
    %38 = vector.multi_reduction <maximumf>, %37, %cst_16 [1] : vector<8x16xf32> to vector<8xf32>
    %39 = vector.shape_cast %38 : vector<8xf32> to vector<8x1xf32>
    %40 = vector.broadcast %39 : vector<8x1xf32> to vector<8x16xf32>
    %41 = arith.subf %37, %40 : vector<8x16xf32>
    %42 = tpu.iota {dimensions = array<i32: 1>} : vector<8x16xi32>
    %43 = vector.broadcast %36 : vector<8x1xi32> to vector<8x16xi32>
    %44 = arith.cmpi eq, %42, %43 : vector<8x16xi32>
    %cst_17 = arith.constant 0.000000e+00 : f32
    %45 = vector.broadcast %cst_17 : f32 to vector<8x16xf32>
    %46 = arith.select %44, %41, %45 : vector<8x16xi1>, vector<8x16xf32>
    %cst_18 = arith.constant dense<0.000000e+00> : vector<8xf32>
    %47 = vector.multi_reduction <add>, %46, %cst_18 [1] : vector<8x16xf32> to vector<8xf32>
    %48 = vector.shape_cast %47 : vector<8xf32> to vector<8x1xf32>
    %49 = math.exp %41 : vector<8x16xf32>
    %cst_19 = arith.constant dense<0.000000e+00> : vector<8xf32>
    %50 = vector.multi_reduction <add>, %49, %cst_19 [1] : vector<8x16xf32> to vector<8xf32>
    %51 = vector.shape_cast %50 : vector<8xf32> to vector<8x1xf32>
    %52 = math.log %51 : vector<8x1xf32>
    %53 = arith.subf %52, %48 : vector<8x1xf32>
    %cst_20 = arith.constant 0.000000e+00 : f32
    %54 = vector.broadcast %cst_20 : f32 to vector<8x1xf32>
    %55 = arith.select %10, %53, %54 : vector<8x1xi1>, vector<8x1xf32>
    %56 = arith.addf %35, %55 : vector<8x1xf32>
    %c0_21 = arith.constant 0 : index
    %c0_22 = arith.constant 0 : index
    %57 = vector.load %arg7[%c0_21, %c0_22] : memref<8x1xf32, #tpu.memory_space<vmem>>, vector<8x1xf32>
    tpu.vector_store %arg7[%c0_21, %c0_22], %56 {strides = array<i32>} : memref<8x1xf32, #tpu.memory_space<vmem>>, vector<8x1xf32>,
    %c0_i32_23 = arith.constant 0 : i32
    %58 = arith.cmpi eq, %arg1, %c0_i32_23 : i32
    %59 = arith.extui %58 : i1 to i32
    %c0_i32_24 = arith.constant 0 : i32
    %60 = arith.cmpi ne, %59, %c0_i32_24 : i32
    scf.if %60 {
      %c0_25 = arith.constant 0 : index
      %c0_26 = arith.constant 0 : index
      %61 = vector.load %arg6[%c0_25, %c0_26] : memref<8x1xf32, #tpu.memory_space<vmem>>, vector<8x1xf32>
      %62 = vector.shape_cast %61 : vector<8x1xf32> to vector<1x8x1xf32>
      %cst_27 = arith.constant dense<0.000000e+00> : vector<1xf32>
      %63 = vector.multi_reduction <add>, %62, %cst_27 [1, 2] : vector<1x8x1xf32> to vector<1xf32>
      %64 = vector.shape_cast %63 : vector<1xf32> to vector<1x1x1xf32>
      %65 = vector.extract %64[0, 0, 0] : f32 from vector<1x1x1xf32>
      %c0_28 = arith.constant 0 : index
      %c0_29 = arith.constant 0 : index
      %66 = vector.load %arg7[%c0_28, %c0_29] : memref<8x1xf32, #tpu.memory_space<vmem>>, vector<8x1xf32>
      %67 = vector.shape_cast %66 : vector<8x1xf32> to vector<1x8x1xf32>
      %cst_30 = arith.constant dense<0.000000e+00> : vector<1xf32>
      %68 = vector.multi_reduction <add>, %67, %cst_30 [1, 2] : vector<1x8x1xf32> to vector<1xf32>
      %69 = vector.shape_cast %68 : vector<1xf32> to vector<1x1x1xf32>
      %70 = vector.extract %69[0, 0, 0] : f32 from vector<1x1x1xf32>
      %71 = tpu.iota {dimensions = array<i32: 2>} : vector<1x1x128xi32>
      %c0_i32_31 = arith.constant 0 : i32
      %72 = vector.broadcast %c0_i32_31 : i32 to vector<1x1x128xi32>
      %73 = arith.cmpi eq, %71, %72 : vector<1x1x128xi32>
      %c1_i32_32 = arith.constant 1 : i32
      %74 = vector.broadcast %c1_i32_32 : i32 to vector<1x1x128xi32>
      %75 = arith.cmpi eq, %71, %74 : vector<1x1x128xi32>
      %cst_33 = arith.constant 0.000000e+00 : f32
      %76 = vector.broadcast %70 : f32 to vector<1x1x128xf32>
      %77 = vector.broadcast %cst_33 : f32 to vector<1x1x128xf32>
      %78 = arith.select %75, %76, %77 : vector<1x1x128xi1>, vector<1x1x128xf32>
      %79 = vector.broadcast %65 : f32 to vector<1x1x128xf32>
      %80 = arith.select %73, %79, %78 : vector<1x1x128xi1>, vector<1x1x128xf32>
      %c0_34 = arith.constant 0 : index
      %c0_35 = arith.constant 0 : index
      %c0_36 = arith.constant 0 : index
      %81 = vector.load %arg5[%c0_34, %c0_35, %c0_36] : memref<1x1x128xf32, #tpu.memory_space<vmem>>, vector<1x1x128xf32>
      tpu.vector_store %arg5[%c0_34, %c0_35, %c0_36], %80 {strides = array<i32>} : memref<1x1x128xf32, #tpu.memory_space<vmem>>, vector<1x1x128xf32>,
    } else {
    }
    return
  }
  func.func @transform_0(%arg0: i32, %arg1: i32) -> (i32, i32) {
    %c1_i32 = arith.constant 1 : i32
    %0 = arith.muli %arg0, %c1_i32 : i32
    %1 = arith.addi %0, %arg1 : i32
    %c0_i32 = arith.constant 0 : i32
    %2 = arith.minsi %1, %c0_i32 : i32
    %c0_i32_0 = arith.constant 0 : i32
    %c0_i32_1 = arith.constant 0 : i32
    return %2, %c0_i32_0 : i32, i32
  }
  func.func @transform_1(%arg0: i32, %arg1: i32) -> (i32, i32) {
    %c1_i32 = arith.constant 1 : i32
    %0 = arith.muli %arg0, %c1_i32 : i32
    %1 = arith.addi %0, %arg1 : i32
    %c0_i32 = arith.constant 0 : i32
    %2 = arith.minsi %1, %c0_i32 : i32
    %c0_i32_0 = arith.constant 0 : i32
    %c0_i32_1 = arith.constant 0 : i32
    return %2, %c0_i32_0 : i32, i32
  }
  func.func @transform_2(%arg0: i32, %arg1: i32) -> (i32, i32) {
    %c1_i32 = arith.constant 1 : i32
    %0 = arith.muli %arg0, %c1_i32 : i32
    %1 = arith.addi %0, %arg1 : i32
    %c0_i32 = arith.constant 0 : i32
    %2 = arith.minsi %1, %c0_i32 : i32
    %c0_i32_0 = arith.constant 0 : i32
    %c0_i32_1 = arith.constant 0 : i32
    return %2, %c0_i32_0 : i32, i32
  }
  func.func @transform_3(%arg0: i32, %arg1: i32) -> (i32, i32, i32) {
    %c0_i32 = arith.constant 0 : i32
    %c0_i32_0 = arith.constant 0 : i32
    %c0_i32_1 = arith.constant 0 : i32
    return %arg0, %c0_i32, %c0_i32_0 : i32, i32, i32
  }
}

</mosaic_0001>

<llo_original>
// kernel: tpu_custom_call.1
$region0: #{tpu_custom_call.1}
  #allocation0 [shape = 'u32[]', space=smem, size = 0x4, offset = 0x4, fixed_abs, tag = 'smem constant byte address 0x4 - core index']
  #allocation1 [shape = 'u32[144,128]{1,0:T(1,128)}', space=vmem, size = 0x12000, scoped, tag = 'internal scratch']
  #allocation2 [shape = 'f32[8,1]{1,0:T(8,128)}', space=vmem, size = 0x1000, scoped, tag = 'scratch operand']
  #allocation3 [shape = 'f32[8,1]{1,0:T(8,128)}', space=vmem, size = 0x1000, scoped, tag = 'scratch operand']
  %s0 = inlined_call_operand.vmem [shape: f32[4,8], index: 0, kind: input, shape index: {}]
  %s1 = inlined_call_operand.hbm [shape: f32[4,16], index: 1, kind: input, shape index: {}]
  %s2 = inlined_call_operand.vmem [shape: s32[4,2], index: 2, kind: input, shape index: {}]
  %s3 = inlined_call_operand.hbm [shape: f32[2,1,128], index: 3, kind: output, shape index: {}]
  %s4 = sld [smem:[#allocation0]]
  $region57: #{tpu_custom_call.1} parent=0
    _
  %s6 = ssub.s32 1, %s4
  %s7 = scalar_select 0, %s6, %s4
  $region1: #{tpu_custom_call.1} parent=0
    #allocation4 [shape = 'u8[8192]{0}', space=vmem, size = 0x2000, scoped, tag = 'input window, operand 1']
    #allocation5 [shape = 's32[2]{0}', space=sflag, size = 0x8, scoped, tag = 'scoped memory for tpu_custom_call.1']
    #allocation6 [shape = 's32[2]{0}', space=sflag, size = 0x8, scoped, tag = 'scoped memory for tpu_custom_call.1']
    #allocation7 [shape = 'u8[1024]{0}', space=vmem, size = 0x400, scoped, tag = 'output window, operand 0']
    %8 = vsyncpa [#allocation5], 0
    %s9 = scalar_lea.sflag [#allocation5], 1
    %10 = vsyncpa %s9, 0
    %11 = vsyncpa [#allocation6], 0
    %s12 = scalar_lea.sflag [#allocation6], 1
    %13 = vsyncpa %s12, 0
    loop: start=0, step=1, limit=4
    $region2: #{tpu_custom_call.1} parent=1 // loop_pre_header
      _
    $region3: #{tpu_custom_call.1} parent=1 // loop_header
      %s15 = sphi 0, %s19
      %p16 = scmp.ge.s32.totalorder %s15, 4
      %s22 = sphi 0, %s34
      %s23 = sphi 0, %s30
      %s24 = sphi 0, %s22
      %s25 = sphi 0, %s23
      %s26 = sphi 0, %s24
      %s27 = sphi 0, %s25
      %s43 = sphi 0, %s45
      %s46 = sphi 0, %s43
      %s47 = sphi 0, %s46
      %s63 = sphi 0, %s47
      %s75 = sphi 0, %s77
      %s78 = sphi 0, %s75
      %s79 = sphi 0, %s78
      %s95 = sphi 0, %s79
      %s107 = sphi 0, %s109
      %s110 = sphi 0, %s107
      %s111 = sphi 0, %s110
      %s127 = sphi 0, %s111
      %s133 = sphi 0, %s135
      %s136 = sphi 0, %s133
      %s137 = sphi 0, %s136
      %s153 = sphi 0, %s137
    $region4: #{tpu_custom_call.1} parent=1 // loop_header_branch
      %18 = sbr.rel (%p16) target = $region8
    $region5: #{tpu_custom_call.1} parent=1 // loop_body
      %s20 = ssub.s32 %s15, 1
      %s21 = ssub.s32 %s15, 2
      %s28 = sadd.s32 1, %s23
      %p29 = scmp.ge.s32.totalorder %s28, 1
      %s30 = scalar_select %p29, 0, %s28
      %s31 = sadd.s32 1, %s22
      %s32 = scalar_select %p29, %s31, %s22
      %p33 = scmp.ge.s32.totalorder %s32, 2
      %s34 = scalar_select %p33, 0, %s32
      %s35 = sadd.s32 %s22, %s23
      %p36 = scmp.lt.s32.totalorder %s35, 0
      %s37 = scalar_select %p36, %s35, 0
      %s38 = sadd.s32 %s34, %s30
      %p39 = scmp.lt.s32.totalorder %s38, 0
      %s40 = scalar_select %p39, %s38, 0
      %s41 = ssub.s32 %s37, %s40
      %p42 = scmp.eq.s32.totalorder %s41, 0
      %s44 = sadd.s32 %s43, 1
      %s45 = scalar_select %p42, %s43, %s44
      %p48 = pneg %p42
      %p49 = scmp.eq.s32.totalorder %s15, 1
      %p50 = por %p48, %p49
      %p51 = scmp.ne.s32.totalorder %s43, %s46
      %p52 = scmp.eq.s32.totalorder %s15, 0
      %p53 = por %p51, %p52
      %p54 = scmp.ne.s32.totalorder %s43, %s46
      %p55 = scmp.eq.s32.totalorder %s20, 1
      %p56 = por %p54, %p55
      %p57 = scmp.ne.s32.totalorder %s46, %s47
      %p58 = scmp.eq.s32.totalorder %s20, 0
      %p59 = por %p57, %p58
      %p60 = scmp.ne.s32.totalorder %s46, %s47
      %p61 = scmp.eq.s32.totalorder %s21, 1
      %p62 = por %p60, %p61
      %p64 = scmp.ne.s32.totalorder %s47, %s63
      %p65 = scmp.eq.s32.totalorder %s21, 0
      %p66 = por %p64, %p65
      %s67 = sadd.s32 %s22, %s23
      %p68 = scmp.lt.s32.totalorder %s67, 0
      %s69 = scalar_select %p68, %s67, 0
      %s70 = sadd.s32 %s34, %s30
      %p71 = scmp.lt.s32.totalorder %s70, 0
      %s72 = scalar_select %p71, %s70, 0
      %s73 = ssub.s32 %s69, %s72
      %p74 = scmp.eq.s32.totalorder %s73, 0
      %s76 = sadd.s32 %s75, 1
      %s77 = scalar_select %p74, %s75, %s76
      %p80 = pneg %p74
      %p81 = scmp.eq.s32.totalorder %s15, 1
      %p82 = por %p80, %p81
      %p83 = scmp.ne.s32.totalorder %s75, %s78
      %p84 = scmp.eq.s32.totalorder %s15, 0
      %p85 = por %p83, %p84
      %p86 = scmp.ne.s32.totalorder %s75, %s78
      %p87 = scmp.eq.s32.totalorder %s20, 1
      %p88 = por %p86, %p87
      %p89 = scmp.ne.s32.totalorder %s78, %s79
      %p90 = scmp.eq.s32.totalorder %s20, 0
      %p91 = por %p89, %p90
      %p92 = scmp.ne.s32.totalorder %s78, %s79
      %p93 = scmp.eq.s32.totalorder %s21, 1
      %p94 = por %p92, %p93
      %p96 = scmp.ne.s32.totalorder %s79, %s95
      %p97 = scmp.eq.s32.totalorder %s21, 0
      %p98 = por %p96, %p97
      %s99 = sadd.s32 %s22, %s23
      %p100 = scmp.lt.s32.totalorder %s99, 0
      %s101 = scalar_select %p100, %s99, 0
      %s102 = sadd.s32 %s34, %s30
      %p103 = scmp.lt.s32.totalorder %s102, 0
      %s104 = scalar_select %p103, %s102, 0
      %s105 = ssub.s32 %s101, %s104
      %p106 = scmp.eq.s32.totalorder %s105, 0
      %s108 = sadd.s32 %s107, 1
      %s109 = scalar_select %p106, %s107, %s108
      %p112 = pneg %p106
      %p113 = scmp.eq.s32.totalorder %s15, 1
      %p114 = por %p112, %p113
      %p115 = scmp.ne.s32.totalorder %s107, %s110
      %p116 = scmp.eq.s32.totalorder %s15, 0
      %p117 = por %p115, %p116
      %p118 = scmp.ne.s32.totalorder %s107, %s110
      %p119 = scmp.eq.s32.totalorder %s20, 1
      %p120 = por %p118, %p119
      %p121 = scmp.ne.s32.totalorder %s110, %s111
      %p122 = scmp.eq.s32.totalorder %s20, 0
      %p123 = por %p121, %p122
      %p124 = scmp.ne.s32.totalorder %s110, %s111
      %p125 = scmp.eq.s32.totalorder %s21, 1
      %p126 = por %p124, %p125
      %p128 = scmp.ne.s32.totalorder %s111, %s127
      %p129 = scmp.eq.s32.totalorder %s21, 0
      %p130 = por %p128, %p129
      %s131 = ssub.s32 %s22, %s34
      %p132 = scmp.eq.s32.totalorder %s131, 0
      %s134 = sadd.s32 %s133, 1
      %s135 = scalar_select %p132, %s133, %s134
      %p138 = pneg %p132
      %p139 = scmp.eq.s32.totalorder %s15, 1
      %p140 = por %p138, %p139
      %p141 = scmp.ne.s32.totalorder %s133, %s136
      %p142 = scmp.eq.s32.totalorder %s15, 0
      %p143 = por %p141, %p142
      %p144 = scmp.ne.s32.totalorder %s133, %s136
      %p145 = scmp.eq.s32.totalorder %s20, 1
      %p146 = por %p144, %p145
      %p147 = scmp.ne.s32.totalorder %s136, %s137
      %p148 = scmp.eq.s32.totalorder %s20, 0
      %p149 = por %p147, %p148
      %p150 = scmp.ne.s32.totalorder %s136, %s137
      %p151 = scmp.eq.s32.totalorder %s21, 1
      %p152 = por %p150, %p151
      %p154 = scmp.ne.s32.totalorder %s137, %s153
      %p155 = scmp.eq.s32.totalorder %s21, 0
      %p156 = por %p154, %p155
      %p157 = scmp.le.s32.totalorder 1, %s15
      %p158 = scmp.lt.s32.totalorder %s15, 3
      %p159 = pnand %p157, %p158
      %p160 = pneg %p159
      // Predicated region
      $region9: #{tpu_custom_call.1} parent=5 // pred_check
        _
      $region10: #{tpu_custom_call.1} parent=5 // pred_check_branch
        %162 = sbr.rel (%p159) target = $region12
      $region11: #{tpu_custom_call.1} parent=5 // pred_region
        %s163 = ssub.s32 %s15, 1
      $region12: #{tpu_custom_call.1} parent=5 // pred_fallthru
        _
      %p164 = scmp.lt.s32.totalorder %s15, 2
      // Predicated region
      $region13: #{tpu_custom_call.1} parent=5 // pred_check
        %p165 = pneg %p164
      $region14: #{tpu_custom_call.1} parent=5 // pred_check_branch
        %167 = sbr.rel (%p165) target = $region16
      $region15: #{tpu_custom_call.1} parent=5 // pred_region
        // Predicated region
        $region17: #{tpu_custom_call.1} parent=15 // pred_check
          %p168 = pneg %p53
        $region18: #{tpu_custom_call.1} parent=15 // pred_check_branch
          %170 = sbr.rel (%p168) target = $region20
        $region19: #{tpu_custom_call.1} parent=15 // pred_region
          %s171 = sadd.s32 %s22, %s23
          %p172 = scmp.lt.s32.totalorder %s171, 0
          %s173 = scalar_select %p172, %s171, 0
          %s174 = smul.u32 2, %s173
          %s175 = ssub.s32 1, %s174
          %s176 = smul.u32 64, %s175
          %p177 = scmp.lt.s32.totalorder %s174, 0
          %s178 = scalar_select %p177, %s174, 0
          %s179 = smul.addr %s178, 4
          %s180 = scalar_lea.vmem %s0, %s179
          %s181 = sadd.s32 %s22, %s23
          %p182 = scmp.lt.s32.totalorder %s181, 0
          %s183 = scalar_select %p182, %s181, 0
          %s184 = smul.u32 2, %s183
          %s185 = ssub.s32 1, %s184
          %s186 = smul.u32 64, %s185
        $region20: #{tpu_custom_call.1} parent=15 // pred_fallthru
          _
        // Predicated region
        $region21: #{tpu_custom_call.1} parent=15 // pred_check
          %p187 = pneg %p85
        $region22: #{tpu_custom_call.1} parent=15 // pred_check_branch
          %189 = sbr.rel (%p187) target = $region24
        $region23: #{tpu_custom_call.1} parent=15 // pred_region
          %s190 = sand.u32 %s75, 1
          %s191 = scalar_lea.sflag [#allocation5], %s190
          %s192 = sand.u32 %s75, 1
          %s193 = smul.addr %s192, 8
          %s194 = scalar_lea.vmem [#allocation4], %s193
          %s195 = sadd.s32 %s22, %s23
          %p196 = scmp.lt.s32.totalorder %s195, 0
          %s197 = scalar_select %p196, %s195, 0
          %s198 = smul.u32 2, %s197
          %s199 = ssub.s32 1, %s198
          %s200 = smul.u32 64, %s199
          %s202 = ssub.s32 128, %s200
          %203 = vsyncadd %s191, %s202
          %p204 = scmp.ne.s32.totalorder 0, %s200
          %s205 = smul.addr %s198, 64
          %s206 = scalar_lea.hbm %s1, %s205
          %s207 = smul.u32 4, %s199
          %s208 = sshll.u32 %s194, 4
          %s209 = int_to_ptr.vmem [resolvable:$true] %s208
          %s210 = sshll.u32 %s207, 4
          %214 = dma.hbm_to_vmem [thread:$0]  (%p204), %s206, %s210, %s209, %s191, 64, 64, 4
        $region24: #{tpu_custom_call.1} parent=15 // pred_fallthru
          _
        // Predicated region
        $region25: #{tpu_custom_call.1} parent=15 // pred_check
          %p215 = pneg %p117
        $region26: #{tpu_custom_call.1} parent=15 // pred_check_branch
          %217 = sbr.rel (%p215) target = $region28
        $region27: #{tpu_custom_call.1} parent=15 // pred_region
          %s218 = sadd.s32 %s22, %s23
          %p219 = scmp.lt.s32.totalorder %s218, 0
          %s220 = scalar_select %p219, %s218, 0
          %s221 = smul.u32 2, %s220
          %s222 = ssub.s32 1, %s221
          %s223 = smul.u32 64, %s222
          %p224 = scmp.lt.s32.totalorder %s221, 0
          %s225 = scalar_select %p224, %s221, 0
          %s226 = smul.addr %s225, 4
          %s227 = scalar_lea.vmem %s2, %s226
          %s228 = sadd.s32 %s22, %s23
          %p229 = scmp.lt.s32.totalorder %s228, 0
          %s230 = scalar_select %p229, %s228, 0
          %s231 = smul.u32 2, %s230
          %s232 = ssub.s32 1, %s231
          %s233 = smul.u32 64, %s232
        $region28: #{tpu_custom_call.1} parent=15 // pred_fallthru
          _
      $region16: #{tpu_custom_call.1} parent=5 // pred_fallthru
        _
      %p234 = scmp.le.s32.totalorder 1, %s15
      %p235 = scmp.lt.s32.totalorder %s15, 3
      %p236 = pnand %p234, %p235
      %p237 = pneg %p236
      // Predicated region
      $region29: #{tpu_custom_call.1} parent=5 // pred_check
        _
      $region30: #{tpu_custom_call.1} parent=5 // pred_check_branch
        %239 = sbr.rel (%p236) target = $region32
      $region31: #{tpu_custom_call.1} parent=5 // pred_region
        %s240 = ssub.s32 %s15, 1
        %s241 = sand.u32 %s78, 1
        %s242 = scalar_lea.sflag [#allocation5], %s241
        %s243 = sand.u32 %s78, 1
        %s244 = smul.addr %s243, 8
        %s245 = scalar_lea.vmem [#allocation4], %s244
        // Predicated region
        $region33: #{tpu_custom_call.1} parent=31 // pred_check
          %p246 = pneg %p91
        $region34: #{tpu_custom_call.1} parent=31 // pred_check_branch
          %248 = sbr.rel (%p246) target = $region36
        $region35: #{tpu_custom_call.1} parent=31 // pred_region
          %249 = dma.done %s242, 128
        $region36: #{tpu_custom_call.1} parent=31 // pred_fallthru
          _
        %s250 = sadd.s32 %s24, %s25
        %p251 = scmp.lt.s32.totalorder %s250, 0
        %s252 = scalar_select %p251, %s250, 0
        %s253 = smul.u32 2, %s252
        %s254 = ssub.s32 1, %s253
        %s255 = smul.u32 64, %s254
        %p256 = scmp.lt.s32.totalorder %s253, 0
        %s257 = scalar_select %p256, %s253, 0
        %s258 = smul.addr %s257, 4
        %s259 = scalar_lea.vmem %s0, %s258
        %p260 = pneg %p59
        %p261 = pneg %p56
        %s262 = sand.u32 %s78, 1
        %s263 = scalar_lea.sflag [#allocation5], %s262
        %s264 = sand.u32 %s78, 1
        %s265 = smul.addr %s264, 8
        %s266 = scalar_lea.vmem [#allocation4], %s265
        %p267 = pneg %p91
        %p268 = pneg %p88
        %s269 = sadd.s32 %s24, %s25
        %p270 = scmp.lt.s32.totalorder %s269, 0
        %s271 = scalar_select %p270, %s269, 0
        %s272 = smul.u32 2, %s271
        %s273 = ssub.s32 1, %s272
        %s274 = smul.u32 64, %s273
        %p275 = scmp.lt.s32.totalorder %s272, 0
        %s276 = scalar_select %p275, %s272, 0
        %s277 = smul.addr %s276, 4
        %s278 = scalar_lea.vmem %s2, %s277
        %p279 = pneg %p123
        %p280 = pneg %p120
        %p281 = pneg %p149
        %p282 = pneg %p146
        %s283 = sand.u32 %s136, 1
        %s284 = scalar_lea.sflag [#allocation6], %s283
        %s285 = sand.u32 %s136, 1
        %s286 = scalar_lea.vmem [#allocation7], %s285
        %s287 = sadd.s32 %s24, %s25
        %p288 = scmp.lt.s32.totalorder %s287, 0
        %s289 = scalar_select %p288, %s287, 0
        %s290 = smul.u32 2, %s289
        %s291 = ssub.s32 1, %s290
        %s292 = smul.u32 64, %s291
        %p293 = scmp.lt.s32.totalorder %s290, 0
        %s294 = scalar_select %p293, %s290, 0
        %s295 = smul.addr %s294, 4
        %s296 = scalar_lea.vmem %s0, %s295
        %s297 = sadd.s32 %s24, %s25
        %p298 = scmp.lt.s32.totalorder %s297, 0
        %s299 = scalar_select %p298, %s297, 0
        %s300 = smul.u32 2, %s299
        %s301 = ssub.s32 1, %s300
        %s302 = smul.u32 64, %s301
        %s303 = sadd.s32 %s24, %s25
        %p304 = scmp.lt.s32.totalorder %s303, 0
        %s305 = scalar_select %p304, %s303, 0
        %s306 = smul.u32 2, %s305
        %s307 = ssub.s32 1, %s306
        %s308 = smul.u32 64, %s307
        %s309 = sadd.s32 %s24, %s25
        %p310 = scmp.lt.s32.totalorder %s309, 0
        %s311 = scalar_select %p310, %s309, 0
        %s312 = smul.u32 2, %s311
        %s313 = ssub.s32 1, %s312
        %s314 = smul.u32 64, %s313
        %p315 = scmp.lt.s32.totalorder %s312, 0
        %s316 = scalar_select %p315, %s312, 0
        %s317 = smul.addr %s316, 4
        %s318 = scalar_lea.vmem %s2, %s317
        %s319 = sadd.s32 %s24, %s25
        %p320 = scmp.lt.s32.totalorder %s319, 0
        %s321 = scalar_select %p320, %s319, 0
        %s322 = smul.u32 2, %s321
        %s323 = ssub.s32 1, %s322
        %s324 = smul.u32 64, %s323
        %p325 = scmp.eq.s32.totalorder %s25, 0
        // Predicated region
        $region37: #{tpu_custom_call.1} parent=31 // pred_check
          %p326 = pneg %p325
        $region38: #{tpu_custom_call.1} parent=31 // pred_check_branch
          %328 = sbr.rel (%p326) target = $region40
        $region39: #{tpu_custom_call.1} parent=31 // pred_region
          %vm329 = vcmask 7168
          %330 = vst.msk [vmem:[#allocation2] sm:$0xff] %vm329, 0.0
          %331 = vst.msk [vmem:[#allocation3] sm:$0xff] %vm329, 0.0
        $region40: #{tpu_custom_call.1} parent=31 // pred_fallthru
          _
        %s332 = sadd.s32 %s24, %s25
        %s333 = smul.u32 %s332, 8
        %v334 = vlaneseq
        %v335 = vshrl.u32 %v334, 7
        %v336 = vstv %s333
        %v337 = vadd.s32 %v336, %v335
        %vm338 = vcmp.lt.s32.totalorder %v337, 4
        %v339 = vld [vmem:[%s318] sm:$0xff]
        %v340 = vld [vmem:[#allocation2] sm:$0xff]
        %v341 = vld [vmem:[%s296] sm:$0xff]
        %vm342 = vcmask 64512
        %v343 = vsel %vm342, %v341, -inf
        %344 = vmax.xlane.f32.xlu0 %v343
        %v345 = vpop.xlane.xlu0 %344
        %v346 = vsub.f32 %v341, %v345
        %v347 = vlaneseq
        %v348 = vand.u32 %v347, 127
        %349 = vset.pattern.permute.xlu0 0
        %350 = vperm.xlu0 %349, %v339
        %v351 = vpop.permute.xlu0 %350
        %vm352 = vcmp.eq.s32.totalorder %v348, %v351
        %v353 = vsel %vm352, %v346, 0.0
        %v354 = vsel %vm342, %v353, 0.0
        %355 = vadd.xlane.f32.xlu0 %v354
        %v356 = vpop.xlane.xlu0 %355
        %v357 = vmul.f32 %v346, 1.442695
        %v358 = vpow.pop %v357
        %v359 = vsel %vm342, %v358, 0.0
        %360 = vadd.xlane.f32.xlu0 %v359
        %v361 = vpop.xlane.xlu0 %360
        %v362 = vlog2.pop %v361
        %v363 = vmul.f32 %v362, 0.6931472
        %v364 = vsub.f32 %v363, %v356
        %v365 = vsel %vm338, %v364, 0.0
        %v366 = vadd.f32 %v340, %v365
        %vm367 = vcmask 7168
        %368 = vst.msk [vmem:[#allocation2] sm:$0xff] %vm367, %v366
        %v369 = vld [vmem:[#allocation3] sm:$0xff]
        %v370 = vld [vmem:[%s245] sm:$0xff]
        %vm371 = vcmask 130048
        %v372 = vsel %vm371, %v370, -inf
        %373 = vmax.xlane.f32.xlu0 %v372
        %v374 = vpop.xlane.xlu0 %373
        %v375 = vsub.f32 %v370, %v374
        %376 = vset.pattern.permute.xlu0 1
        %377 = vperm.xlu0 %376, %v339
        %v378 = vpop.permute.xlu0 %377
        %vm379 = vcmp.eq.s32.totalorder %v348, %v378
        %v380 = vsel %vm379, %v375, 0.0
        %v381 = vsel %vm371, %v380, 0.0
        %382 = vadd.xlane.f32.xlu0 %v381
        %v383 = vpop.xlane.xlu0 %382
        %v384 = vmul.f32 %v375, 1.442695
        %v385 = vpow.pop %v384
        %v386 = vsel %vm371, %v385, 0.0
        %387 = vadd.xlane.f32.xlu0 %v386
        %v388 = vpop.xlane.xlu0 %387
        %v389 = vlog2.pop %v388
        %v390 = vmul.f32 %v389, 0.6931472
        %v391 = vsub.f32 %v390, %v383
        %v392 = vsel %vm338, %v391, 0.0
        %v393 = vadd.f32 %v369, %v392
        %394 = vst.msk [vmem:[#allocation3] sm:$0xff] %vm367, %v393
        // Predicated region
        $region41: #{tpu_custom_call.1} parent=31 // pred_check
          %p395 = pneg %p325
        $region42: #{tpu_custom_call.1} parent=31 // pred_check_branch
          %397 = sbr.rel (%p395) target = $region44
        $region43: #{tpu_custom_call.1} parent=31 // pred_region
          %v398 = vld [vmem:[#allocation2] sm:$0xff]
          %v399 = vsel %vm367, %v398, 0.0
          %400 = vadd.xlane.f32.xlu0 %v399
          %v401 = vpop.xlane.xlu0 %400
          %v402 = vrot.slane %v401, 4
          %v403 = vadd.f32 %v401, %v402
          %v404 = vrot.slane %v403, 2
          %v405 = vadd.f32 %v403, %v404
          %v406 = vrot.slane %v405, 1
          %v407 = vadd.f32 %v405, %v406
          %s408 = vtos %v407
          %v409 = vld [vmem:[#allocation3] sm:$0xff]
          %v410 = vsel %vm367, %v409, 0.0
          %411 = vadd.xlane.f32.xlu0 %v410
          %v412 = vpop.xlane.xlu0 %411
          %v413 = vrot.slane %v412, 4
          %v414 = vadd.f32 %v412, %v413
          %v415 = vrot.slane %v414, 2
          %v416 = vadd.f32 %v414, %v415
          %v417 = vrot.slane %v416, 1
          %v418 = vadd.f32 %v416, %v417
          %s419 = vtos %v418
          %vm420 = vcmp.eq.s32.totalorder %v348, 0
          %vm421 = vcmp.eq.s32.totalorder %v348, 1
          %v422 = vstv %s419
          %v423 = vsel %vm421, %v422, 0.0
          %v424 = vstv %s408
          %v425 = vsel %vm420, %v424, %v423
          %426 = vst [vmem:[%s286] sm:$0x1] %v425
        $region44: #{tpu_custom_call.1} parent=31 // pred_fallthru
          _
        %s427 = sand.u32 %s136, 1
        %s428 = scalar_lea.sflag [#allocation6], %s427
        %s429 = sand.u32 %s136, 1
        %s430 = scalar_lea.vmem [#allocation7], %s429
        // Predicated region
        $region45: #{tpu_custom_call.1} parent=31 // pred_check
          %p431 = pneg %p146
        $region46: #{tpu_custom_call.1} parent=31 // pred_check_branch
          %433 = sbr.rel (%p431) target = $region48
        $region47: #{tpu_custom_call.1} parent=31 // pred_region
          %s435 = ssub.s32 16, 16
          %436 = vsyncadd %s428, %s435
          %s437 = smul.addr %s24, 16
          %s438 = scalar_lea.hbm %s3, %s437
          %s440 = sshll.u32 %s430, 4
          %s441 = int_to_ptr.vmem [resolvable:$true] %s440
          %443 = dma.vmem_to_hbm [thread:$0]  %s441, 16, %s438, %s428
        $region48: #{tpu_custom_call.1} parent=31 // pred_fallthru
          _
      $region32: #{tpu_custom_call.1} parent=5 // pred_fallthru
        _
      %p444 = scmp.le.s32.totalorder 2, %s15
      // Predicated region
      $region49: #{tpu_custom_call.1} parent=5 // pred_check
        %p445 = pneg %p444
      $region50: #{tpu_custom_call.1} parent=5 // pred_check_branch
        %447 = sbr.rel (%p445) target = $region52
      $region51: #{tpu_custom_call.1} parent=5 // pred_region
        %s448 = ssub.s32 %s15, 2
        // Predicated region
        $region53: #{tpu_custom_call.1} parent=51 // pred_check
          %p449 = pneg %p152
        $region54: #{tpu_custom_call.1} parent=51 // pred_check_branch
          %451 = sbr.rel (%p449) target = $region56
        $region55: #{tpu_custom_call.1} parent=51 // pred_region
          %s452 = sand.u32 %s137, 1
          %s453 = scalar_lea.sflag [#allocation6], %s452
          %s454 = sand.u32 %s137, 1
          %s455 = scalar_lea.vmem [#allocation7], %s454
          %456 = dma.done %s453, 16
        $region56: #{tpu_custom_call.1} parent=51 // pred_fallthru
          _
      $region52: #{tpu_custom_call.1} parent=5 // pred_fallthru
        _
    $region6: #{tpu_custom_call.1} parent=1 // loop_footer
      %s19 = sadd.s32 1, %s15
    $region7: #{tpu_custom_call.1} parent=1 // loop_footer_branch
      %14 = sbr.rel target = $region3
    $region8: #{tpu_custom_call.1} parent=1 // loop_exit
      _
    %457 = vsyncpa [#allocation5], 1
    %s458 = scalar_lea.sflag [#allocation5], 1
    %459 = vsyncpa %s458, 1
    %460 = vsyncpa [#allocation6], 1
    %s461 = scalar_lea.sflag [#allocation6], 1
    %462 = vsyncpa %s461, 1

</llo_original>
